<compile_context>
chip_gen: v7x
topology: tpu7x:2x2x1
jax: 0.10.0
libtpu: 0.0.40
codegen_flags: <defaults>
</compile_context>

<pallas_src>
import functools

import jax
import jax.numpy as jnp
from jax.experimental import pallas as pl
from jax.experimental.pallas import tpu as pltpu


def _round_up(x, m):
    return ((x + m - 1) // m) * m


def _greedy_hash_loss_kernel(u_ref, lbl_ref, w_ref, cmask_ref,
                             ce_out_ref, cube_out_ref,
                             acc_ce_ref, acc_cube_ref, *, n_rows):
    c = pl.program_id(0)                  # core / batch-split axis ("parallel")
    i = pl.program_id(1)                  # tile axis within this core ("arbitrary")
    tiles_per_core = pl.num_programs(1)
    tile_n = u_ref.shape[0]

    @pl.when(i == 0)
    def _init():
        acc_ce_ref[...] = jnp.zeros_like(acc_ce_ref)
        acc_cube_ref[...] = jnp.zeros_like(acc_cube_ref)

    # Logical (unclamped) row offset of this tile. Tiles whose logical range is
    # entirely past n_rows were clamped to a real block by the index_map; their
    # rows are all invalid here and contribute exactly zero.
    row0 = (c * tiles_per_core + i) * tile_n
    row = jax.lax.broadcasted_iota(jnp.int32, (tile_n, 1), 0) + row0
    valid = row < n_rows                                    # (tile_n, 1) bool

    # Where-mask u so stale VMEM in ragged / duplicated tiles can't inject NaN/Inf.
    u = jnp.where(valid, u_ref[...], 0.0)                   # (tile_n, bit) f32

    # b = sign(u)  (torch.sign: sign(0) == 0).
    b = jnp.where(u > 0.0, 1.0, jnp.where(u < 0.0, -1.0, 0.0))

    # y_pre = b @ W on the MXU; padded class columns of W are zero.
    y_pre = jnp.dot(b, w_ref[...], preferred_element_type=jnp.float32)  # (tile_n, c_pad)

    c_pad = y_pre.shape[1]
    col = jax.lax.broadcasted_iota(jnp.int32, (tile_n, c_pad), 1)

    # Label-logit gather with one masked lane-reduce (real labels < n_class).
    lbl = lbl_ref[...]                                      # (tile_n, 1) int32 (stale ok)
    sel = jnp.sum(jnp.where(col == lbl, y_pre, 0.0), axis=1, keepdims=True)

    # Stable logsumexp; padded class lanes are knocked out by the resident
    # additive mask row (0 on real classes, -1e30 on pad).
    logits = y_pre + cmask_ref[...]                         # (tile_n, c_pad)
    m = jnp.max(logits, axis=1, keepdims=True)
    lse = m + jnp.log(jnp.sum(jnp.exp(logits - m), axis=1, keepdims=True))

    ce_row = jnp.where(valid, lse - sel, 0.0)               # (tile_n, 1)

    dev = jnp.abs(u) - 1.0
    cube_row = jnp.where(
        valid, jnp.sum(jnp.abs(dev * dev * dev), axis=1, keepdims=True), 0.0)

    acc_ce_ref[...] += ce_row
    acc_cube_ref[...] += cube_row

    @pl.when(i == tiles_per_core - 1)
    def _finalize():
        ce_tot = jnp.sum(acc_ce_ref[...], axis=0, keepdims=True)      # (1, 1)
        cube_tot = jnp.sum(acc_cube_ref[...], axis=0, keepdims=True)  # (1, 1)
        ce_out_ref[0] = jnp.broadcast_to(ce_tot, ce_out_ref.shape[1:])
        cube_out_ref[0] = jnp.broadcast_to(cube_tot, cube_out_ref.shape[1:])


def greedy_hash_loss(u, onehot_y, w_t, alpha, *, tile_n=2048, labels=None):
    """u: (N, bit) f32, onehot_y: (N, n_class) f32, w_t: (bit, n_class) f32.

    Pass `labels` (int, shape (N,)) to skip the one-hot argmax HBM pass.
    """
    n, bit = u.shape
    n_class = onehot_y.shape[1]

    if labels is None:
        # Still a separate full (N, n_class) HBM pass; avoid it by passing labels=.
        labels = jnp.argmax(onehot_y, axis=1)
    labels = labels.astype(jnp.int32).reshape(n, 1)

    c_pad = _round_up(max(n_class, 128), 128)

    # Large tiles amortize the fixed per-grid-step overhead; keep a multiple of 8.
    tile_n = max(8, min(int(tile_n), _round_up(n, 8)))
    tile_n = _round_up(tile_n, 8)
    n_tiles_total = pl.cdiv(n, tile_n)
    num_cores = 2 if n_tiles_total >= 2 else 1        # v7x dual-TC batch split
    tiles_per_core = pl.cdiv(n_tiles_total, num_cores)

    u = u.astype(jnp.float32)
    w_p = jnp.pad(w_t.astype(jnp.float32), ((0, 0), (0, c_pad - n_class)))
    # Resident additive class mask row: 0 on real classes, -1e30 on pad lanes.
    cmask = jnp.where(jnp.arange(c_pad) < n_class, 0.0, -1e30)
    cmask = cmask.astype(jnp.float32).reshape(1, c_pad)

    def row_block(ci, i):
        # Clamp logically-out-of-range tiles onto the last real block; their
        # rows are fully masked in the kernel (validity uses the unclamped index).
        return (jnp.minimum(ci * tiles_per_core + i, n_tiles_total - 1), 0)

    kernel = functools.partial(_greedy_hash_loss_kernel, n_rows=n)

    cost = pl.CostEstimate(
        flops=2 * n * bit * c_pad + 10 * n * (bit + c_pad),
        transcendentals=n * c_pad,
        bytes_accessed=4 * (n * bit + n + bit * c_pad + c_pad
                            + 2 * num_cores * 8 * 128),
    )

    ce_part, cube_part = pl.pallas_call(
        kernel,
        out_shape=(jax.ShapeDtypeStruct((num_cores, 8, 128), jnp.float32),
                   jax.ShapeDtypeStruct((num_cores, 8, 128), jnp.float32)),
        grid_spec=pltpu.PrefetchScalarGridSpec(
            num_scalar_prefetch=0,
            grid=(num_cores, tiles_per_core),
            in_specs=[
                pl.BlockSpec((tile_n, bit), row_block),           # u tile (ragged ok)
                pl.BlockSpec((tile_n, 1), row_block),             # int32 labels tile
                pl.BlockSpec((bit, c_pad), lambda ci, i: (0, 0)),  # W (resident)
                pl.BlockSpec((1, c_pad), lambda ci, i: (0, 0)),    # class mask row
            ],
            out_specs=(pl.BlockSpec((1, 8, 128), lambda ci, i: (ci, 0, 0)),
                       pl.BlockSpec((1, 8, 128), lambda ci, i: (ci, 0, 0))),
            scratch_shapes=[pltpu.VMEM((tile_n, 1), jnp.float32),   # per-row CE acc
                            pltpu.VMEM((tile_n, 1), jnp.float32)],  # per-row cube acc
        ),
        compiler_params=pltpu.CompilerParams(
            dimension_semantics=("parallel", "arbitrary"),
            vmem_limit_bytes=48 * 1024 * 1024,
        ),
        cost_estimate=cost,
    )(u, labels, w_p, cmask)

    # Combine per-core partial sums and normalize in the wrapper.
    ce_sum = jnp.sum(ce_part[:, 0, 0])
    cube_sum = jnp.sum(cube_part[:, 0, 0])
    loss1 = ce_sum / jnp.float32(n)
    loss2 = jnp.float32(alpha) * cube_sum / jnp.float32(n * bit)
    return loss1 + loss2


def greedy_hash_loss_ref(u, onehot_y, w_t, alpha):
    """Pure-JAX reference (mirrors the PyTorch forward)."""
    b = jnp.sign(u)
    y = jnp.argmax(onehot_y, axis=1)
    y_pre = b @ w_t
    lse = jax.scipy.special.logsumexp(y_pre, axis=1)
    loss1 = jnp.mean(lse - jnp.take_along_axis(y_pre, y[:, None], axis=1)[:, 0])
    loss2 = alpha * jnp.mean(jnp.abs((jnp.abs(u) - 1.0) ** 3))
    return loss1 + loss2


def _make_inputs(key, n, bit, n_class):
    k_u, k_y, k_w = jax.random.split(key, 3)
    u = jax.random.normal(k_u, (n, bit), dtype=jnp.float32)
    labels = jax.random.randint(k_y, (n,), 0, n_class)
    onehot_y = jax.nn.one_hot(labels, n_class, dtype=jnp.float32)
    # nn.Linear(bit, n_class, bias=False) default init: U(-1/sqrt(bit), 1/sqrt(bit)),
    # weight shape (n_class, bit); stored transposed as (bit, n_class).
    bound = 1.0 / jnp.sqrt(jnp.float32(bit))
    w = jax.random.uniform(k_w, (n_class, bit), dtype=jnp.float32,
                           minval=-bound, maxval=bound)
    return u, onehot_y, w.T


if __name__ == "__main__":
    key = jax.random.PRNGKey(0)
    k1, k2 = jax.random.split(key)

    # Case 1: small shapes matching the module (batch N=8, bit=32, n_class=16).
    N, BIT, N_CLASS, ALPHA = 8, 32, 16, 0.1
    u, onehot_y, w_t = _make_inputs(k1, N, BIT, N_CLASS)
    loss = greedy_hash_loss(u, onehot_y, w_t, ALPHA)
    jax.block_until_ready(loss)
    ref = greedy_hash_loss_ref(u, onehot_y, w_t, ALPHA)
    assert jnp.allclose(loss, ref, rtol=1e-5, atol=1e-5), (loss, ref)

    # Case 2: multi-tile grid + ragged last tile + dual-core split path
    # (N=45 with tile_n=16 -> 3 logical tiles, 2 "cores", 1 clamped OOB tile).
    N2 = 45
    u2, onehot_y2, w_t2 = _make_inputs(k2, N2, BIT, N_CLASS)
    loss2 = greedy_hash_loss(u2, onehot_y2, w_t2, ALPHA, tile_n=16)
    jax.block_until_ready(loss2)
    ref2 = greedy_hash_loss_ref(u2, onehot_y2, w_t2, ALPHA)
    assert jnp.allclose(loss2, ref2, rtol=1e-5, atol=1e-5), (loss2, ref2)

    print("KERNEL_OK")
</pallas_src>

<mosaic_0001>
module attributes {stable_mosaic.version = 11 : i64} {
  func.func @_greedy_hash_loss_kernel(%arg0: i32, %arg1: i32, %arg2: memref<8x32xf32, #tpu.memory_space<vmem>>, %arg3: memref<8x1xi32, #tpu.memory_space<vmem>>, %arg4: memref<32x128xf32, #tpu.memory_space<vmem>>, %arg5: memref<1x128xf32, #tpu.memory_space<vmem>>, %arg6: memref<1x8x128xf32, #tpu.memory_space<vmem>>, %arg7: memref<1x8x128xf32, #tpu.memory_space<vmem>>, %arg8: memref<8x1xf32, #tpu.memory_space<vmem>>, %arg9: memref<8x1xf32, #tpu.memory_space<vmem>>) attributes {dimension_semantics = [#tpu.dimension_semantics<parallel>, #tpu.dimension_semantics<arbitrary>], iteration_bounds = array<i64: 1, 1>, scalar_prefetch = 0 : i64, scratch_operands = 2 : i64, tpu.core_type = #tpu.core_type<tc>, window_params = [{transform_indices = @transform_0, window_bounds = array<i64: 8, 32>}, {transform_indices = @transform_1, window_bounds = array<i64: 8, 1>}, {pipeline_mode = #tpu.pipeline_mode<synchronous>, transform_indices = @transform_2, window_bounds = array<i64: 32, 128>}, {pipeline_mode = #tpu.pipeline_mode<synchronous>, transform_indices = @transform_3, window_bounds = array<i64: 1, 128>}, {transform_indices = @transform_4, window_bounds = array<i64: 1, 8, 128>}, {transform_indices = @transform_5, window_bounds = array<i64: 1, 8, 128>}]} {
    %c0_i32 = arith.constant 0 : i32
    %0 = arith.cmpi eq, %arg1, %c0_i32 : i32
    %1 = arith.extui %0 : i1 to i32
    %c0_i32_0 = arith.constant 0 : i32
    %2 = arith.cmpi ne, %1, %c0_i32_0 : i32
    scf.if %2 {
      %cst_33 = arith.constant 0.000000e+00 : f32
      %69 = vector.broadcast %cst_33 : f32 to vector<8x1xf32>
      %c0_34 = arith.constant 0 : index
      %c0_35 = arith.constant 0 : index
      %70 = vector.load %arg8[%c0_34, %c0_35] : memref<8x1xf32, #tpu.memory_space<vmem>>, vector<8x1xf32>
      tpu.vector_store %arg8[%c0_34, %c0_35], %69 {strides = array<i32>} : memref<8x1xf32, #tpu.memory_space<vmem>>, vector<8x1xf32>,
      %cst_36 = arith.constant 0.000000e+00 : f32
      %71 = vector.broadcast %cst_36 : f32 to vector<8x1xf32>
      %c0_37 = arith.constant 0 : index
      %c0_38 = arith.constant 0 : index
      %72 = vector.load %arg9[%c0_37, %c0_38] : memref<8x1xf32, #tpu.memory_space<vmem>>, vector<8x1xf32>
      tpu.vector_store %arg9[%c0_37, %c0_38], %71 {strides = array<i32>} : memref<8x1xf32, #tpu.memory_space<vmem>>, vector<8x1xf32>,
    } else {
    }
    %c1_i32 = arith.constant 1 : i32
    %3 = arith.muli %arg0, %c1_i32 : i32
    %4 = arith.addi %3, %arg1 : i32
    %c8_i32 = arith.constant 8 : i32
    %5 = arith.muli %4, %c8_i32 : i32
    %6 = tpu.iota {dimensions = array<i32: 0>} : vector<8x1xi32>
    %7 = vector.broadcast %5 : i32 to vector<8x1xi32>
    %8 = arith.addi %6, %7 : vector<8x1xi32>
    %c8_i32_1 = arith.constant 8 : i32
    %9 = vector.broadcast %c8_i32_1 : i32 to vector<8x1xi32>
    %10 = arith.cmpi slt, %8, %9 : vector<8x1xi32>
    %c0 = arith.constant 0 : index
    %c0_2 = arith.constant 0 : index
    %11 = vector.load %arg2[%c0, %c0_2] : memref<8x32xf32, #tpu.memory_space<vmem>>, vector<8x32xf32>
    %cst = arith.constant 0.000000e+00 : f32
    %12 = vector.shape_cast %10 : vector<8x1xi1> to vector<8x1xi1>
    %13 = vector.broadcast %12 : vector<8x1xi1> to vector<8x32xi1>
    %14 = vector.broadcast %cst : f32 to vector<8x32xf32>
    %15 = arith.select %13, %11, %14 : vector<8x32xi1>, vector<8x32xf32>
    %cst_3 = arith.constant 0.000000e+00 : f32
    %16 = vector.broadcast %cst_3 : f32 to vector<8x32xf32>
    %17 = arith.cmpf ogt, %15, %16 : vector<8x32xf32>
    %cst_4 = arith.constant 0.000000e+00 : f32
    %18 = vector.broadcast %cst_4 : f32 to vector<8x32xf32>
    %19 = arith.cmpf olt, %15, %18 : vector<8x32xf32>
    %cst_5 = arith.constant -1.000000e+00 : f32
    %cst_6 = arith.constant 0.000000e+00 : f32
    %20 = vector.broadcast %cst_5 : f32 to vector<8x32xf32>
    %21 = vector.broadcast %cst_6 : f32 to vector<8x32xf32>
    %22 = arith.select %19, %20, %21 : vector<8x32xi1>, vector<8x32xf32>
    %cst_7 = arith.constant 1.000000e+00 : f32
    %23 = vector.broadcast %cst_7 : f32 to vector<8x32xf32>
    %24 = arith.select %17, %23, %22 : vector<8x32xi1>, vector<8x32xf32>
    %c0_8 = arith.constant 0 : index
    %c0_9 = arith.constant 0 : index
    %25 = vector.load %arg4[%c0_8, %c0_9] : memref<32x128xf32, #tpu.memory_space<vmem>>, vector<32x128xf32>
    %cst_10 = arith.constant dense<0.000000e+00> : vector<8x128xf32>
    %26 = tpu.matmul %24, %25, %cst_10 {dimension_numbers = #tpu.dot_dimension_numbers<[1], [0], [0], [1], [0, 0, 1, 1], [], []>} : vector<8x32xf32>, vector<32x128xf32>, vector<8x128xf32> -> vector<8x128xf32>
    %27 = tpu.iota {dimensions = array<i32: 1>} : vector<8x128xi32>
    %c0_11 = arith.constant 0 : index
    %c0_12 = arith.constant 0 : index
    %28 = vector.load %arg3[%c0_11, %c0_12] : memref<8x1xi32, #tpu.memory_space<vmem>>, vector<8x1xi32>
    %29 = vector.broadcast %28 : vector<8x1xi32> to vector<8x128xi32>
    %30 = arith.cmpi eq, %27, %29 : vector<8x128xi32>
    %cst_13 = arith.constant 0.000000e+00 : f32
    %31 = vector.broadcast %cst_13 : f32 to vector<8x128xf32>
    %32 = arith.select %30, %26, %31 : vector<8x128xi1>, vector<8x128xf32>
    %cst_14 = arith.constant dense<0.000000e+00> : vector<8xf32>
    %33 = vector.multi_reduction <add>, %32, %cst_14 [1] : vector<8x128xf32> to vector<8xf32>
    %34 = vector.shape_cast %33 : vector<8xf32> to vector<8x1xf32>
    %c0_15 = arith.constant 0 : index
    %c0_16 = arith.constant 0 : index
    %35 = vector.load %arg5[%c0_15, %c0_16] : memref<1x128xf32, #tpu.memory_space<vmem>>, vector<1x128xf32>
    %36 = vector.broadcast %35 : vector<1x128xf32> to vector<8x128xf32>
    %37 = arith.addf %26, %36 : vector<8x128xf32>
    %cst_17 = arith.constant dense<0xFF800000> : vector<8xf32>
    %38 = vector.multi_reduction <maximumf>, %37, %cst_17 [1] : vector<8x128xf32> to vector<8xf32>
    %39 = vector.shape_cast %38 : vector<8xf32> to vector<8x1xf32>
    %40 = vector.broadcast %39 : vector<8x1xf32> to vector<8x128xf32>
    %41 = arith.subf %37, %40 : vector<8x128xf32>
    %42 = math.exp %41 : vector<8x128xf32>
    %cst_18 = arith.constant dense<0.000000e+00> : vector<8xf32>
    %43 = vector.multi_reduction <add>, %42, %cst_18 [1] : vector<8x128xf32> to vector<8xf32>
    %44 = vector.shape_cast %43 : vector<8xf32> to vector<8x1xf32>
    %45 = math.log %44 : vector<8x1xf32>
    %46 = arith.addf %39, %45 : vector<8x1xf32>
    %47 = arith.subf %46, %34 : vector<8x1xf32>
    %cst_19 = arith.constant 0.000000e+00 : f32
    %48 = vector.broadcast %cst_19 : f32 to vector<8x1xf32>
    %49 = arith.select %10, %47, %48 : vector<8x1xi1>, vector<8x1xf32>
    %50 = math.absf %15 : vector<8x32xf32>
    %cst_20 = arith.constant 1.000000e+00 : f32
    %51 = vector.broadcast %cst_20 : f32 to vector<8x32xf32>
    %52 = arith.subf %50, %51 : vector<8x32xf32>
    %53 = arith.mulf %52, %52 : vector<8x32xf32>
    %54 = arith.mulf %53, %52 : vector<8x32xf32>
    %55 = math.absf %54 : vector<8x32xf32>
    %cst_21 = arith.constant dense<0.000000e+00> : vector<8xf32>
    %56 = vector.multi_reduction <add>, %55, %cst_21 [1] : vector<8x32xf32> to vector<8xf32>
    %57 = vector.shape_cast %56 : vector<8xf32> to vector<8x1xf32>
    %cst_22 = arith.constant 0.000000e+00 : f32
    %58 = vector.broadcast %cst_22 : f32 to vector<8x1xf32>
    %59 = arith.select %10, %57, %58 : vector<8x1xi1>, vector<8x1xf32>
    %c0_23 = arith.constant 0 : index
    %c0_24 = arith.constant 0 : index
    %60 = vector.load %arg8[%c0_23, %c0_24] : memref<8x1xf32, #tpu.memory_space<vmem>>, vector<8x1xf32>
    %61 = arith.addf %60, %49 : vector<8x1xf32>
    %c0_25 = arith.constant 0 : index
    %c0_26 = arith.constant 0 : index
    %62 = vector.load %arg8[%c0_25, %c0_26] : memref<8x1xf32, #tpu.memory_space<vmem>>, vector<8x1xf32>
    tpu.vector_store %arg8[%c0_25, %c0_26], %61 {strides = array<i32>} : memref<8x1xf32, #tpu.memory_space<vmem>>, vector<8x1xf32>,
    %c0_27 = arith.constant 0 : index
    %c0_28 = arith.constant 0 : index
    %63 = vector.load %arg9[%c0_27, %c0_28] : memref<8x1xf32, #tpu.memory_space<vmem>>, vector<8x1xf32>
    %64 = arith.addf %63, %59 : vector<8x1xf32>
    %c0_29 = arith.constant 0 : index
    %c0_30 = arith.constant 0 : index
    %65 = vector.load %arg9[%c0_29, %c0_30] : memref<8x1xf32, #tpu.memory_space<vmem>>, vector<8x1xf32>
    tpu.vector_store %arg9[%c0_29, %c0_30], %64 {strides = array<i32>} : memref<8x1xf32, #tpu.memory_space<vmem>>, vector<8x1xf32>,
    %c0_i32_31 = arith.constant 0 : i32
    %66 = arith.cmpi eq, %arg1, %c0_i32_31 : i32
    %67 = arith.extui %66 : i1 to i32
    %c0_i32_32 = arith.constant 0 : i32
    %68 = arith.cmpi ne, %67, %c0_i32_32 : i32
    scf.if %68 {
      %c0_33 = arith.constant 0 : index
      %c0_34 = arith.constant 0 : index
      %69 = vector.load %arg8[%c0_33, %c0_34] : memref<8x1xf32, #tpu.memory_space<vmem>>, vector<8x1xf32>
      %cst_35 = arith.constant dense<0.000000e+00> : vector<1xf32>
      %70 = vector.multi_reduction <add>, %69, %cst_35 [0] : vector<8x1xf32> to vector<1xf32>
      %71 = vector.shape_cast %70 : vector<1xf32> to vector<1x1xf32>
      %c0_36 = arith.constant 0 : index
      %c0_37 = arith.constant 0 : index
      %72 = vector.load %arg9[%c0_36, %c0_37] : memref<8x1xf32, #tpu.memory_space<vmem>>, vector<8x1xf32>
      %cst_38 = arith.constant dense<0.000000e+00> : vector<1xf32>
      %73 = vector.multi_reduction <add>, %72, %cst_38 [0] : vector<8x1xf32> to vector<1xf32>
      %74 = vector.shape_cast %73 : vector<1xf32> to vector<1x1xf32>
      %75 = vector.shape_cast %71 : vector<1x1xf32> to vector<1x1xf32>
      %76 = vector.broadcast %75 : vector<1x1xf32> to vector<8x128xf32>
      %c0_39 = arith.constant 0 : index
      %c0_40 = arith.constant 0 : index
      %c0_41 = arith.constant 0 : index
      %77 = vector.load %arg6[%c0_39, %c0_40, %c0_41] : memref<1x8x128xf32, #tpu.memory_space<vmem>>, vector<1x8x128xf32>
      %78 = vector.shape_cast %77 : vector<1x8x128xf32> to vector<8x128xf32>
      %79 = vector.shape_cast %76 : vector<8x128xf32> to vector<1x8x128xf32>
      tpu.vector_store %arg6[%c0_39, %c0_40, %c0_41], %79 {strides = array<i32>} : memref<1x8x128xf32, #tpu.memory_space<vmem>>, vector<1x8x128xf32>,
      %80 = vector.shape_cast %74 : vector<1x1xf32> to vector<1x1xf32>
      %81 = vector.broadcast %80 : vector<1x1xf32> to vector<8x128xf32>
      %c0_42 = arith.constant 0 : index
      %c0_43 = arith.constant 0 : index
      %c0_44 = arith.constant 0 : index
      %82 = vector.load %arg7[%c0_42, %c0_43, %c0_44] : memref<1x8x128xf32, #tpu.memory_space<vmem>>, vector<1x8x128xf32>
      %83 = vector.shape_cast %82 : vector<1x8x128xf32> to vector<8x128xf32>
      %84 = vector.shape_cast %81 : vector<8x128xf32> to vector<1x8x128xf32>
      tpu.vector_store %arg7[%c0_42, %c0_43, %c0_44], %84 {strides = array<i32>} : memref<1x8x128xf32, #tpu.memory_space<vmem>>, vector<1x8x128xf32>,
    } else {
    }
    return
  }
  func.func @transform_0(%arg0: i32, %arg1: i32) -> (i32, i32) {
    %c1_i32 = arith.constant 1 : i32
    %0 = arith.muli %arg0, %c1_i32 : i32
    %1 = arith.addi %0, %arg1 : i32
    %c0_i32 = arith.constant 0 : i32
    %2 = arith.minsi %1, %c0_i32 : i32
    %c0_i32_0 = arith.constant 0 : i32
    %c0_i32_1 = arith.constant 0 : i32
    return %2, %c0_i32_0 : i32, i32
  }
  func.func @transform_1(%arg0: i32, %arg1: i32) -> (i32, i32) {
    %c1_i32 = arith.constant 1 : i32
    %0 = arith.muli %arg0, %c1_i32 : i32
    %1 = arith.addi %0, %arg1 : i32
    %c0_i32 = arith.constant 0 : i32
    %2 = arith.minsi %1, %c0_i32 : i32
    %c0_i32_0 = arith.constant 0 : i32
    %c0_i32_1 = arith.constant 0 : i32
    return %2, %c0_i32_0 : i32, i32
  }
  func.func @transform_2(%arg0: i32, %arg1: i32) -> (i32, i32) {
    %c0_i32 = arith.constant 0 : i32
    %c0_i32_0 = arith.constant 0 : i32
    %c0_i32_1 = arith.constant 0 : i32
    return %c0_i32, %c0_i32_0 : i32, i32
  }
  func.func @transform_3(%arg0: i32, %arg1: i32) -> (i32, i32) {
    %c0_i32 = arith.constant 0 : i32
    %c0_i32_0 = arith.constant 0 : i32
    %c0_i32_1 = arith.constant 0 : i32
    return %c0_i32, %c0_i32_0 : i32, i32
  }
  func.func @transform_4(%arg0: i32, %arg1: i32) -> (i32, i32, i32) {
    %c0_i32 = arith.constant 0 : i32
    %c0_i32_0 = arith.constant 0 : i32
    %c0_i32_1 = arith.constant 0 : i32
    return %arg0, %c0_i32, %c0_i32_0 : i32, i32, i32
  }
  func.func @transform_5(%arg0: i32, %arg1: i32) -> (i32, i32, i32) {
    %c0_i32 = arith.constant 0 : i32
    %c0_i32_0 = arith.constant 0 : i32
    %c0_i32_1 = arith.constant 0 : i32
    return %arg0, %c0_i32, %c0_i32_0 : i32, i32, i32
  }
}

</mosaic_0001>

<llo_original>
// kernel: tpu_custom_call.1
$region0: #{tpu_custom_call.1}
  #allocation0 [shape = 'u32[]', space=smem, size = 0x4, offset = 0x4, fixed_abs, tag = 'smem constant byte address 0x4 - core index']
  #allocation1 [shape = 'u32[144,128]{1,0:T(1,128)}', space=vmem, size = 0x12000, scoped, tag = 'internal scratch']
  #allocation2 [shape = 'f32[8,1]{1,0:T(8,128)}', space=vmem, size = 0x1000, scoped, tag = 'scratch operand']
  #allocation3 [shape = 'f32[8,1]{1,0:T(8,128)}', space=vmem, size = 0x1000, scoped, tag = 'scratch operand']
  %s0 = inlined_call_operand.vmem [shape: f32[8,32], index: 0, kind: input, shape index: {}]
  %s1 = inlined_call_operand.vmem [shape: s32[8,1], index: 1, kind: input, shape index: {}]
  %s2 = inlined_call_operand.hbm [shape: f32[32,128], index: 2, kind: input, shape index: {}]
  %s3 = inlined_call_operand.vmem [shape: f32[1,128], index: 3, kind: input, shape index: {}]
  %s4 = inlined_call_operand.hbm [shape: f32[1,8,128], index: 4, kind: output, shape index: {0}]
  %s5 = inlined_call_operand.hbm [shape: f32[1,8,128], index: 5, kind: output, shape index: {1}]
  %6 = xla_tuple %s4, %s5
  %s7 = sld [smem:[#allocation0]]
  $region46: #{tpu_custom_call.1} parent=0
    _
  %s9 = ssub.s32 1, %s7
  %s10 = scalar_select 0, %s9, %s7
  $region1: #{tpu_custom_call.1} parent=0
    #allocation4 [shape = 'u8[16384]{0}', space=vmem, size = 0x4000, scoped, tag = 'input window, operand 2, single buffered']
    #allocation5 [shape = 's32[1]{0}', space=sflag, size = 0x4, scoped, tag = 'scoped memory for tpu_custom_call.1']
    #allocation6 [shape = 's32[1]{0}', space=sflag, size = 0x4, scoped, tag = 'scoped memory for tpu_custom_call.1']
    #allocation7 [shape = 'u8[4096]{0}', space=vmem, size = 0x1000, scoped, tag = 'output window, operand 0, single buffered']
    #allocation8 [shape = 'u8[4096]{0}', space=vmem, size = 0x1000, scoped, tag = 'output window, operand 1, single buffered']
    #allocation9 [shape = 's32[1]{0}', space=sflag, size = 0x4, scoped, tag = 'scoped memory for tpu_custom_call.1']
    %11 = vsyncpa [#allocation5], 0
    %12 = vsyncpa [#allocation6], 0
    %13 = vsyncpa [#allocation9], 0
    // Predicated region
    $region2: #{tpu_custom_call.1} parent=1 // pred_check
      _
    $region3: #{tpu_custom_call.1} parent=1 // pred_check_branch
      %15 = sbr.rel (0) target = $region5
    $region4: #{tpu_custom_call.1} parent=1 // pred_region
      %s16 = sadd.s32 0, 0
      %p17 = scmp.lt.s32.totalorder %s16, 0
      %s18 = scalar_select %p17, %s16, 0
      %p19 = scmp.lt.s32.totalorder %s18, 0
      %s20 = scalar_select %p19, %s18, 0
      %s21 = smul.addr %s20, 8
      %s22 = scalar_lea.vmem %s0, %s21
      %s23 = sadd.s32 0, 0
      %p24 = scmp.lt.s32.totalorder %s23, 0
      %s25 = scalar_select %p24, %s23, 0
    $region5: #{tpu_custom_call.1} parent=1 // pred_fallthru
      _
    // Predicated region
    $region6: #{tpu_custom_call.1} parent=1 // pred_check
      _
    $region7: #{tpu_custom_call.1} parent=1 // pred_check_branch
      %27 = sbr.rel (0) target = $region9
    $region8: #{tpu_custom_call.1} parent=1 // pred_region
      %s28 = sadd.s32 0, 0
      %p29 = scmp.lt.s32.totalorder %s28, 0
      %s30 = scalar_select %p29, %s28, 0
      %p31 = scmp.lt.s32.totalorder %s30, 0
      %s32 = scalar_select %p31, %s30, 0
      %s33 = smul.addr %s32, 8
      %s34 = scalar_lea.vmem %s1, %s33
      %s35 = sadd.s32 0, 0
      %p36 = scmp.lt.s32.totalorder %s35, 0
      %s37 = scalar_select %p36, %s35, 0
    $region9: #{tpu_custom_call.1} parent=1 // pred_fallthru
      _
    // Predicated region
    $region10: #{tpu_custom_call.1} parent=1 // pred_check
      _
    $region11: #{tpu_custom_call.1} parent=1 // pred_check_branch
      %39 = sbr.rel (0) target = $region13
    $region12: #{tpu_custom_call.1} parent=1 // pred_region
      %s41 = ssub.s32 512, 512
      %42 = vsyncadd [#allocation5], %s41
      %s43 = sshll.u32 [#allocation4], 4
      %s44 = int_to_ptr.vmem [resolvable:$true] %s43
      %49 = dma.hbm_to_vmem [thread:$0]  %s2, 512, %s44, [#allocation5], 128, 128, 8
    $region13: #{tpu_custom_call.1} parent=1 // pred_fallthru
      _
    // Predicated region
    $region14: #{tpu_custom_call.1} parent=1 // pred_check
      _
    $region15: #{tpu_custom_call.1} parent=1 // pred_check_branch
      %51 = sbr.rel (0) target = $region17
    $region16: #{tpu_custom_call.1} parent=1 // pred_region
      _
    $region17: #{tpu_custom_call.1} parent=1 // pred_fallthru
      _
    // Predicated region
    $region18: #{tpu_custom_call.1} parent=1 // pred_check
      _
    $region19: #{tpu_custom_call.1} parent=1 // pred_check_branch
      %53 = sbr.rel (0) target = $region21
    $region20: #{tpu_custom_call.1} parent=1 // pred_region
      %54 = dma.done [#allocation5], 512
    $region21: #{tpu_custom_call.1} parent=1 // pred_fallthru
      _
    %s55 = sadd.s32 0, 0
    %p56 = scmp.lt.s32.totalorder %s55, 0
    %s57 = scalar_select %p56, %s55, 0
    %p58 = scmp.lt.s32.totalorder %s57, 0
    %s59 = scalar_select %p58, %s57, 0
    %s60 = smul.addr %s59, 8
    %s61 = scalar_lea.vmem %s0, %s60
    %s62 = sadd.s32 0, 0
    %p63 = scmp.lt.s32.totalorder %s62, 0
    %s64 = scalar_select %p63, %s62, 0
    %p65 = scmp.lt.s32.totalorder %s64, 0
    %s66 = scalar_select %p65, %s64, 0
    %s67 = smul.addr %s66, 8
    %s68 = scalar_lea.vmem %s1, %s67
    %s69 = sadd.s32 0, 0
    %p70 = scmp.lt.s32.totalorder %s69, 0
    %s71 = scalar_select %p70, %s69, 0
    %p72 = scmp.lt.s32.totalorder %s71, 0
    %s73 = scalar_select %p72, %s71, 0
    %s74 = smul.addr %s73, 8
    %s75 = scalar_lea.vmem %s0, %s74
    %s76 = sadd.s32 0, 0
    %p77 = scmp.lt.s32.totalorder %s76, 0
    %s78 = scalar_select %p77, %s76, 0
    %s79 = sadd.s32 0, 0
    %p80 = scmp.lt.s32.totalorder %s79, 0
    %s81 = scalar_select %p80, %s79, 0
    %p82 = scmp.lt.s32.totalorder %s81, 0
    %s83 = scalar_select %p82, %s81, 0
    %s84 = smul.addr %s83, 8
    %s85 = scalar_lea.vmem %s1, %s84
    %s86 = sadd.s32 0, 0
    %p87 = scmp.lt.s32.totalorder %s86, 0
    %s88 = scalar_select %p87, %s86, 0
    %p89 = scmp.eq.s32.totalorder 0, 0
    // Predicated region
    $region22: #{tpu_custom_call.1} parent=1 // pred_check
      %p90 = pneg %p89
    $region23: #{tpu_custom_call.1} parent=1 // pred_check_branch
      %92 = sbr.rel (%p90) target = $region25
    $region24: #{tpu_custom_call.1} parent=1 // pred_region
      %vm93 = vcmask 7168
      %94 = vst.msk [vmem:[#allocation2] sm:$0xff] %vm93, 0.0
      %95 = vst.msk [vmem:[#allocation3] sm:$0xff] %vm93, 0.0
    $region25: #{tpu_custom_call.1} parent=1 // pred_fallthru
      _
    %s96 = sadd.s32 0, 0
    %s97 = smul.u32 %s96, 8
    %v98 = vlaneseq
    %v99 = vshrl.u32 %v98, 7
    %v100 = vstv %s97
    %v101 = vadd.s32 %v99, %v100
    %vm102 = vcmp.lt.s32.totalorder %v101, 8
    %v103 = vld [vmem:[%s75] sm:$0xff]
    %v104 = vsel %vm102, 1, 0
    %vm105 = vcmp.eq.s32.totalorder %v104, 1
    %v106 = vsel %vm105, %v103, 0.0
    %vm107 = vcmp.gt.f32.partialorder %v106, 0.0
    %vm108 = vcmp.lt.f32.partialorder %v106, 0.0
    %v109 = vsel %vm108, -1.0, 0.0
    %v110 = vsel %vm107, 1.0, %v109
    %v111 = vld [vmem:[#allocation4] sm:$0xff]
    %v112 = vld [vmem:[#allocation4 + $0x8] sm:$0xff]
    %v113 = vld [vmem:[#allocation4 + $0x10] sm:$0xff]
    %v114 = vld [vmem:[#allocation4 + $0x18] sm:$0xff]
    %vm115 = vcmask 261120
    %v117 = vsel %vm115, %v110, 0
    %119 = vmatprep.subr.mxu0 0.0
    %120 = vmatpush1.msra.mxu0 %v111
    %121 = vmatprep.subr.mxu0 0.0
    %122 = vmatpush1.msra.mxu0 %v112
    %123 = vmatprep.subr.mxu0 0.0
    %124 = vmatpush1.msra.mxu0 %v113
    %125 = vmatprep.subr.mxu0 0.0
    %126 = vmatpush1.msra.mxu0 %v114
    %127 = vmatprep.subr.mxu0 0.0
    %128 = vmatpush1.msra.mxu0 0.0
    %129 = vmatprep.subr.mxu0 0.0
    %130 = vmatpush1.msra.mxu0 0.0
    %131 = vmatprep.subr.mxu0 0.0
    %132 = vmatpush1.msra.mxu0 0.0
    %133 = vmatprep.subr.mxu0 0.0
    %134 = vmatpush1.msra.mxu0 0.0
    %135 = vmatprep.subr.mxu0 0.0
    %136 = vmatpush1.msra.mxu0 0.0
    %137 = vmatprep.subr.mxu0 0.0
    %138 = vmatpush1.msra.mxu0 0.0
    %139 = vmatprep.subr.mxu0 0.0
    %140 = vmatpush1.msra.mxu0 0.0
    %141 = vmatprep.subr.mxu0 0.0
    %142 = vmatpush1.msra.mxu0 0.0
    %143 = vmatprep.subr.mxu0 0.0
    %144 = vmatpush1.msra.mxu0 0.0
    %145 = vmatprep.subr.mxu0 0.0
    %146 = vmatpush1.msra.mxu0 0.0
    %147 = vmatprep.subr.mxu0 0.0
    %148 = vmatpush1.msra.mxu0 0.0
    %149 = vmatprep.subr.mxu0 0.0
    %150 = vmatpush1.msra.mxu0 0.0
    %151 = vmatprep.subr.mxu0 0.0
    %152 = vmatpush1.msra.mxu0 0.0
    %153 = vmatprep.subr.mxu0 0.0
    %154 = vmatpush1.msra.mxu0 0.0
    %155 = vmatprep.subr.mxu0 0.0
    %156 = vmatpush1.msra.mxu0 0.0
    %157 = vmatprep.subr.mxu0 0.0
    %158 = vmatpush1.msra.mxu0 0.0
    %159 = vmatprep.subr.mxu0 0.0
    %160 = vmatpush1.msra.mxu0 0.0
    %161 = vmatprep.subr.mxu0 0.0
    %162 = vmatpush1.msra.mxu0 0.0
    %163 = vmatprep.subr.mxu0 0.0
    %164 = vmatpush1.msra.mxu0 0.0
    %165 = vmatprep.subr.mxu0 0.0
    %166 = vmatpush1.msra.mxu0 0.0
    %167 = vmatprep.subr.mxu0 0.0
    %168 = vmatpush1.msra.mxu0 0.0
    %169 = vmatprep.subr.mxu0 0.0
    %170 = vmatpush1.msra.mxu0 0.0
    %171 = vmatprep.subr.mxu0 0.0
    %172 = vmatpush1.msra.mxu0 0.0
    %173 = vmatprep.subr.mxu0 0.0
    %174 = vmatpush1.msra.mxu0 0.0
    %175 = vmatprep.subr.mxu0 0.0
    %176 = vmatpush1.msra.mxu0 0.0
    %177 = vmatprep.subr.mxu0 0.0
    %178 = vmatpush1.msra.mxu0 0.0
    %179 = vmatprep.subr.mxu0 0.0
    %180 = vmatpush1.msra.mxu0 0.0
    %181 = vmatprep.subr.mxu0 0.0
    %182 = vmatpush1.msra.mxu0 0.0
    %183 = vmatprep.mubr.f32.mxu0 0.0
    %184 = vmatmul.mubr.f32.gmra.mrb[0].mxu0 %v117
    %v185 = vpop.f32.mrb[0].mxu0
    %v186 = vadd.f32 0.0, %v185
    %v187 = vpop.f32.mrb[0].mxu0
    %188 = vdwg.mxu0
    %v189 = vlaneseq
    %v190 = vand.u32 %v189, 127
    %v191 = vld [vmem:[%s85] sm:$0xff]
    %192 = vset.pattern.permute.xlu0 0
    %193 = vperm.xlu0 %192, %v191
    %v194 = vpop.permute.xlu0 %193
    %vm195 = vcmp.eq.s32.totalorder %v190, %v194
    %v196 = vsel %vm195, %v186, 0.0
    %197 = vadd.xlane.f32.xlu0 %v196
    %v198 = vpop.xlane.xlu0 %197
    %v199 = vld [vmem:[%s3] sm:$0x1]
    %v201 = vlaneseq
    %v202 = vshrl.u32 %v201, 7
    %v203 = vsub.s32 0, %v202
    %v204 = vrot.slane %v199, %v203
    %v206 = vadd.f32 %v186, %v204
    %207 = vmax.xlane.f32.xlu0 %v206
    %v208 = vpop.xlane.xlu0 %207
    %v209 = vsub.f32 %v206, %v208
    %v210 = vmul.f32 %v209, 1.442695
    %v211 = vpow.pop %v210
    %212 = vadd.xlane.f32.xlu0 %v211
    %v213 = vpop.xlane.xlu0 %212
    %v214 = vlog2.pop %v213
    %v215 = vmul.f32 %v214, 0.6931472
    %v216 = vadd.f32 %v208, %v215
    %v217 = vsub.f32 %v216, %v198
    %v218 = vsel %vm102, %v217, 0.0
    %v219 = vand.u32 2147483647, %v106
    %v220 = vsub.f32 %v219, 1.0
    %v221 = vmul.f32 %v220, %v220
    %v222 = vmul.f32 %v221, %v220
    %v223 = vand.u32 2147483647, %v222
    %v224 = vsel %vm115, %v223, 0.0
    %225 = vadd.xlane.f32.xlu0 %v224
    %v226 = vpop.xlane.xlu0 %225
    %v227 = vsel %vm102, %v226, 0.0
    %v228 = vld [vmem:[#allocation2] sm:$0xff]
    %v229 = vadd.f32 %v228, %v218
    %vm230 = vcmask 7168
    %231 = vst.msk [vmem:[#allocation2] sm:$0xff] %vm230, %v229
    %v232 = vld [vmem:[#allocation3] sm:$0xff]
    %v233 = vadd.f32 %v232, %v227
    %234 = vst.msk [vmem:[#allocation3] sm:$0xff] %vm230, %v233
    // Predicated region
    $region26: #{tpu_custom_call.1} parent=1 // pred_check
      %p235 = pneg %p89
    $region27: #{tpu_custom_call.1} parent=1 // pred_check_branch
      %237 = sbr.rel (%p235) target = $region29
    $region28: #{tpu_custom_call.1} parent=1 // pred_region
      %v238 = vld [vmem:[#allocation2] sm:$0xff]
      %v239 = vsel %vm230, %v238, 0.0
      %v240 = vrot.slane %v239, 4
      %v241 = vadd.f32 %v239, %v240
      %v242 = vrot.slane %v241, 2
      %v243 = vadd.f32 %v241, %v242
      %v244 = vrot.slane %v243, 1
      %v245 = vadd.f32 %v243, %v244
      %v246 = vld [vmem:[#allocation3] sm:$0xff]
      %v247 = vsel %vm230, %v246, 0.0
      %v248 = vrot.slane %v247, 4
      %v249 = vadd.f32 %v247, %v248
      %v250 = vrot.slane %v249, 2
      %v251 = vadd.f32 %v249, %v250
      %v252 = vrot.slane %v251, 1
      %v253 = vadd.f32 %v251, %v252
      %255 = vset.pattern.permute.xlu0 0
      %256 = vperm.xlu0 %255, %v245
      %v257 = vpop.permute.xlu0 %256
      %259 = vst [vmem:[#allocation7] sm:$0xff] %v257
      %261 = vset.pattern.permute.xlu0 0
      %262 = vperm.xlu0 %261, %v253
      %v263 = vpop.permute.xlu0 %262
      %265 = vst [vmem:[#allocation8] sm:$0xff] %v263
    $region29: #{tpu_custom_call.1} parent=1 // pred_fallthru
      _
    // Predicated region
    $region30: #{tpu_custom_call.1} parent=1 // pred_check
      _
    $region31: #{tpu_custom_call.1} parent=1 // pred_check_branch
      %267 = sbr.rel (0) target = $region33
    $region32: #{tpu_custom_call.1} parent=1 // pred_region
      %s269 = ssub.s32 128, 128
      %270 = vsyncadd [#allocation6], %s269
      %s272 = sshll.u32 [#allocation7], 4
      %s273 = int_to_ptr.vmem [resolvable:$true] %s272
      %275 = dma.vmem_to_hbm [thread:$0]  %s273, 128, %s4, [#allocation6]
    $region33: #{tpu_custom_call.1} parent=1 // pred_fallthru
      _
    // Predicated region
    $region34: #{tpu_custom_call.1} parent=1 // pred_check
      _
    $region35: #{tpu_custom_call.1} parent=1 // pred_check_branch
      %277 = sbr.rel (0) target = $region37
    $region36: #{tpu_custom_call.1} parent=1 // pred_region
      %s279 = ssub.s32 128, 128
      %280 = vsyncadd [#allocation9], %s279
      %s282 = sshll.u32 [#allocation8], 4
      %s283 = int_to_ptr.vmem [resolvable:$true] %s282
      %285 = dma.vmem_to_hbm [thread:$0]  %s283, 128, %s5, [#allocation9]
    $region37: #{tpu_custom_call.1} parent=1 // pred_fallthru
      _
    // Predicated region
    $region38: #{tpu_custom_call.1} parent=1 // pred_check
      _
    $region39: #{tpu_custom_call.1} parent=1 // pred_check_branch
      %287 = sbr.rel (0) target = $region41
    $region40: #{tpu_custom_call.1} parent=1 // pred_region
      %288 = dma.done [#allocation6], 128
    $region41: #{tpu_custom_call.1} parent=1 // pred_fallthru
      _
    // Predicated region
    $region42: #{tpu_custom_call.1} parent=1 // pred_check
      _
    $region43: #{tpu_custom_call.1} parent=1 // pred_check_branch
      %290 = sbr.rel (0) target = $region45
    $region44: #{tpu_custom_call.1} parent=1 // pred_region
      %291 = dma.done [#allocation9], 128
    $region45: #{tpu_custom_call.1} parent=1 // pred_fallthru
      _
    %292 = vsyncpa [#allocation5], 1
    %293 = vsyncpa [#allocation6], 1
    %294 = vsyncpa [#allocation9], 1

</llo_original>
